<compile_context>
chip_gen: v7x
topology: tpu7x:2x2x1
jax: 0.10.0
libtpu: 0.0.40
codegen_flags: <defaults>
</compile_context>

<pallas_src>
import functools

import jax
import jax.numpy as jnp
from jax.experimental import pallas as pl
from jax.experimental.pallas import tpu as pltpu


def _round_up(x, m):
    return ((x + m - 1) // m) * m


def _mlp_fused_kernel(x_ref, w_ref, b_ref, *rest,
                      num_layers, apply_bn, compute_dtype):
    """Push one row-tile of x through the whole layer stack.

    x_ref : (TN, Cp)       activation row tile (compute_dtype, streams from HBM)
    w_ref : (L, Cp, Cp)    all layer weights (compute_dtype, VMEM-resident)
    b_ref : (L, 1, Cp)     all biases (f32, VMEM-resident)
    rest  : [scale_ref, shift_ref,] o_ref
    """
    if apply_bn:
        scale_ref, shift_ref, o_ref = rest
    else:
        (o_ref,) = rest

    act = x_ref[...]
    y = None
    for l in range(num_layers):
        # TODO(synk): dropout before the last linear is an eval-mode/p=0 no-op.
        y = jnp.dot(act, w_ref[l], preferred_element_type=jnp.float32)
        y = y + b_ref[l]                      # (TN, Cp) + (1, Cp)
        if l < num_layers - 1:
            y = jnp.maximum(y, 0.0)
            if apply_bn:
                # eval-mode BatchNorm folded into a per-channel affine
                y = y * scale_ref[l] + shift_ref[l]
            act = y.astype(compute_dtype)     # back to bf16 for the next MXU pass
    o_ref[...] = y.astype(o_ref.dtype)


def mlp_forward(x, w_stack, b_stack, scale_stack, shift_stack, *,
                batch_norm, out_channels, tile_n=256,
                compute_dtype=jnp.bfloat16, out_dtype=None):
    n, c_in = x.shape
    num_layers, cp, _ = w_stack.shape
    out_dtype = out_dtype or x.dtype

    # Row tile: large by default; shrink (16-aligned for bf16 sublane packing)
    # only if N itself is small. Grid uses padded N, never an assert.
    tn = min(tile_n, max(16, _round_up(n, 16)))
    n_pad = _round_up(n, tn)

    # Pad rows and feature dim to the lane-dense padded width (zeros are exact
    # no-ops through the zero-padded weights / biases).
    xp = jnp.zeros((n_pad, cp), compute_dtype)
    xp = xp.at[:n, :c_in].set(x.astype(compute_dtype))

    in_specs = [
        pl.BlockSpec((tn, cp), lambda i: (i, 0)),                 # x row tile (streams)
        pl.BlockSpec((num_layers, cp, cp), lambda i: (0, 0, 0)),  # weights (resident)
        pl.BlockSpec((num_layers, 1, cp), lambda i: (0, 0, 0)),   # biases  (resident)
    ]
    args = [xp, w_stack, b_stack]
    if batch_norm:
        in_specs += [
            pl.BlockSpec((num_layers, 1, cp), lambda i: (0, 0, 0)),  # bn scale
            pl.BlockSpec((num_layers, 1, cp), lambda i: (0, 0, 0)),  # bn shift
        ]
        args += [scale_stack, shift_stack]

    kernel = functools.partial(_mlp_fused_kernel,
                               num_layers=num_layers,
                               apply_bn=batch_norm,
                               compute_dtype=compute_dtype)

    # VMEM budget: double-buffered streaming tiles + resident parameters, with
    # headroom; clamp so we never ask for more than fits on v7x (64 MiB phys).
    it = jnp.dtype(compute_dtype).itemsize
    est = 2 * (tn * cp * it + tn * cp * 4)                       # x tile + out tile
    est += 2 * num_layers * (cp * cp * it + 3 * cp * 4)          # params (dbl-buffered)
    est += 4 * tn * cp * 4                                       # in-kernel temps
    vmem_limit = int(min(max(4 * est, 16 * 2**20), 48 * 2**20))

    out = pl.pallas_call(
        kernel,
        out_shape=jax.ShapeDtypeStruct((n_pad, cp), out_dtype),
        grid_spec=pltpu.PrefetchScalarGridSpec(
            num_scalar_prefetch=0,
            grid=(n_pad // tn,),
            in_specs=in_specs,
            out_specs=pl.BlockSpec((tn, cp), lambda i: (i, 0)),
        ),
        compiler_params=pltpu.CompilerParams(
            dimension_semantics=("parallel",),
            vmem_limit_bytes=vmem_limit),
    )(*args)

    return out[:n, :out_channels]


class MLPPallas:
    """Pallas port of mgn/models/gnn.py::MLP (eval-mode forward)."""

    def __init__(self, in_channels, out_channels, num_layers, batch_norm=False,
                 dropout=0.0, key=None, compute_dtype=jnp.bfloat16, tile_n=256):
        self.in_channels = in_channels
        self.out_channels = out_channels
        self.num_layers = num_layers
        self.batch_norm = batch_norm
        self.dropout = dropout
        self.compute_dtype = compute_dtype
        self.tile_n = tile_n
        if key is None:
            key = jax.random.PRNGKey(0)

        # lane-dense padded feature width shared by all layers
        cp = _round_up(max(in_channels, out_channels, 128), 128)
        self.cp = cp

        # unpadded f32 params (for the reference) + padded stacked (for kernel)
        self.weights, self.biases = [], []        # (in, out), (1, out)
        self.bn_scale, self.bn_shift = [], []     # eval-BN affine
        w_pad, b_pad, s_pad, t_pad = [], [], [], []

        c_in = in_channels
        eps = 1e-5
        for _ in range(num_layers):
            key, kw, kb = jax.random.split(key, 3)
            bound = 1.0 / float(c_in) ** 0.5
            w = jax.random.uniform(kw, (c_in, out_channels), jnp.float32,
                                   minval=-bound, maxval=bound)
            b = jax.random.uniform(kb, (1, out_channels), jnp.float32,
                                   minval=-bound, maxval=bound)
            # BatchNorm1d.reset_parameters(): gamma=1, beta=0, mean=0, var=1
            gamma = jnp.ones((1, out_channels), jnp.float32)
            beta = jnp.zeros((1, out_channels), jnp.float32)
            run_mean = jnp.zeros((1, out_channels), jnp.float32)
            run_var = jnp.ones((1, out_channels), jnp.float32)
            scale = gamma / jnp.sqrt(run_var + eps)
            shift = beta - run_mean * scale

            self.weights.append(w)
            self.biases.append(b)
            self.bn_scale.append(scale)
            self.bn_shift.append(shift)

            w_pad.append(jnp.zeros((cp, cp), compute_dtype)
                         .at[:c_in, :out_channels].set(w.astype(compute_dtype)))
            b_pad.append(jnp.zeros((1, cp), jnp.float32)
                         .at[:, :out_channels].set(b))
            s_pad.append(jnp.ones((1, cp), jnp.float32)
                         .at[:, :out_channels].set(scale))
            t_pad.append(jnp.zeros((1, cp), jnp.float32)
                         .at[:, :out_channels].set(shift))
            c_in = out_channels

        self.w_stack = jnp.stack(w_pad)        # (L, Cp, Cp) bf16
        self.b_stack = jnp.stack(b_pad)        # (L, 1, Cp)  f32
        self.scale_stack = jnp.stack(s_pad)    # (L, 1, Cp)  f32
        self.shift_stack = jnp.stack(t_pad)    # (L, 1, Cp)  f32

    def __call__(self, x):
        return mlp_forward(x, self.w_stack, self.b_stack,
                           self.scale_stack, self.shift_stack,
                           batch_norm=self.batch_norm,
                           out_channels=self.out_channels,
                           tile_n=self.tile_n,
                           compute_dtype=self.compute_dtype)


def _reference_mlp(mlp, x):
    """Plain-JAX reference with the same (bf16 matmul, f32 accumulate) math."""
    cd = mlp.compute_dtype
    act = x
    y = None
    for i in range(mlp.num_layers):
        y = jnp.dot(act.astype(cd), mlp.weights[i].astype(cd),
                    preferred_element_type=jnp.float32)
        y = y + mlp.biases[i]
        if i < mlp.num_layers - 1:
            y = jnp.maximum(y, 0.0)
            if mlp.batch_norm:
                y = y * mlp.bn_scale[i] + mlp.bn_shift[i]
            act = y
    return y.astype(x.dtype)


if __name__ == "__main__":
    key = jax.random.PRNGKey(0)
    k_x, k_p1, k_p2 = jax.random.split(key, 3)

    N, IN_C, OUT_C, LAYERS = 512, 16, 32, 3
    x = jax.random.normal(k_x, (N, IN_C), jnp.float32)

    # module defaults: batch_norm=False, dropout=0.0
    mlp = MLPPallas(IN_C, OUT_C, LAYERS, batch_norm=False, dropout=0.0, key=k_p1)
    out = jax.block_until_ready(mlp(x))
    ref = _reference_mlp(mlp, x)
    assert out.shape == (N, OUT_C)
    assert jnp.allclose(out, ref, atol=2e-2, rtol=2e-2), "mismatch vs reference (no BN)"

    # with eval-mode BatchNorm
    mlp_bn = MLPPallas(IN_C, OUT_C, LAYERS, batch_norm=True, dropout=0.0, key=k_p2)
    out_bn = jax.block_until_ready(mlp_bn(x))
    ref_bn = _reference_mlp(mlp_bn, x)
    assert out_bn.shape == (N, OUT_C)
    assert jnp.allclose(out_bn, ref_bn, atol=2e-2, rtol=2e-2), "mismatch vs reference (BN)"

    print("KERNEL_OK")
</pallas_src>

<mosaic_0001>
module attributes {stable_mosaic.version = 11 : i64} {
  func.func @_mlp_fused_kernel(%arg0: i32, %arg1: memref<256x128xbf16, #tpu.memory_space<vmem>>, %arg2: memref<3x128x128xbf16, #tpu.memory_space<vmem>>, %arg3: memref<3x1x128xf32, #tpu.memory_space<vmem>>, %arg4: memref<256x128xf32, #tpu.memory_space<vmem>>) attributes {dimension_semantics = [#tpu.dimension_semantics<parallel>], iteration_bounds = array<i64: 2>, scalar_prefetch = 0 : i64, scratch_operands = 0 : i64, tpu.core_type = #tpu.core_type<tc>, window_params = [{transform_indices = @transform_0, window_bounds = array<i64: 256, 128>}, {pipeline_mode = #tpu.pipeline_mode<synchronous>, transform_indices = @transform_1, window_bounds = array<i64: 3, 128, 128>}, {pipeline_mode = #tpu.pipeline_mode<synchronous>, transform_indices = @transform_2, window_bounds = array<i64: 3, 1, 128>}, {transform_indices = @transform_3, window_bounds = array<i64: 256, 128>}]} {
    %c0 = arith.constant 0 : index
    %c0_0 = arith.constant 0 : index
    %0 = vector.load %arg1[%c0, %c0_0] : memref<256x128xbf16, #tpu.memory_space<vmem>>, vector<256x128xbf16>
    %c0_1 = arith.constant 0 : index
    %c0_2 = arith.constant 0 : index
    %c0_3 = arith.constant 0 : index
    %1 = vector.load %arg2[%c0_1, %c0_2, %c0_3] : memref<3x128x128xbf16, #tpu.memory_space<vmem>>, vector<1x128x128xbf16>
    %2 = vector.shape_cast %1 : vector<1x128x128xbf16> to vector<128x128xbf16>
    %cst = arith.constant dense<0.000000e+00> : vector<256x128xf32>
    %3 = tpu.matmul %0, %2, %cst {dimension_numbers = #tpu.dot_dimension_numbers<[1], [0], [0], [1], [0, 0, 1, 1], [], []>} : vector<256x128xbf16>, vector<128x128xbf16>, vector<256x128xf32> -> vector<256x128xf32>
    %c0_4 = arith.constant 0 : index
    %c0_5 = arith.constant 0 : index
    %c0_6 = arith.constant 0 : index
    %4 = vector.load %arg3[%c0_4, %c0_5, %c0_6] : memref<3x1x128xf32, #tpu.memory_space<vmem>>, vector<1x1x128xf32>
    %5 = vector.shape_cast %4 : vector<1x1x128xf32> to vector<1x128xf32>
    %6 = vector.broadcast %5 : vector<1x128xf32> to vector<256x128xf32>
    %7 = arith.addf %3, %6 : vector<256x128xf32>
    %cst_7 = arith.constant 0.000000e+00 : f32
    %8 = vector.broadcast %cst_7 : f32 to vector<256x128xf32>
    %9 = arith.maximumf %7, %8 : vector<256x128xf32>
    %10 = arith.truncf %9 : vector<256x128xf32> to vector<256x128xbf16>
    %c1 = arith.constant 1 : index
    %c0_8 = arith.constant 0 : index
    %c0_9 = arith.constant 0 : index
    %11 = vector.load %arg2[%c1, %c0_8, %c0_9] : memref<3x128x128xbf16, #tpu.memory_space<vmem>>, vector<1x128x128xbf16>
    %12 = vector.shape_cast %11 : vector<1x128x128xbf16> to vector<128x128xbf16>
    %cst_10 = arith.constant dense<0.000000e+00> : vector<256x128xf32>
    %13 = tpu.matmul %10, %12, %cst_10 {dimension_numbers = #tpu.dot_dimension_numbers<[1], [0], [0], [1], [0, 0, 1, 1], [], []>} : vector<256x128xbf16>, vector<128x128xbf16>, vector<256x128xf32> -> vector<256x128xf32>
    %c1_11 = arith.constant 1 : index
    %c0_12 = arith.constant 0 : index
    %c0_13 = arith.constant 0 : index
    %14 = vector.load %arg3[%c1_11, %c0_12, %c0_13] : memref<3x1x128xf32, #tpu.memory_space<vmem>>, vector<1x1x128xf32>
    %15 = vector.shape_cast %14 : vector<1x1x128xf32> to vector<1x128xf32>
    %16 = vector.broadcast %15 : vector<1x128xf32> to vector<256x128xf32>
    %17 = arith.addf %13, %16 : vector<256x128xf32>
    %cst_14 = arith.constant 0.000000e+00 : f32
    %18 = vector.broadcast %cst_14 : f32 to vector<256x128xf32>
    %19 = arith.maximumf %17, %18 : vector<256x128xf32>
    %20 = arith.truncf %19 : vector<256x128xf32> to vector<256x128xbf16>
    %c2 = arith.constant 2 : index
    %c0_15 = arith.constant 0 : index
    %c0_16 = arith.constant 0 : index
    %21 = vector.load %arg2[%c2, %c0_15, %c0_16] : memref<3x128x128xbf16, #tpu.memory_space<vmem>>, vector<1x128x128xbf16>
    %22 = vector.shape_cast %21 : vector<1x128x128xbf16> to vector<128x128xbf16>
    %cst_17 = arith.constant dense<0.000000e+00> : vector<256x128xf32>
    %23 = tpu.matmul %20, %22, %cst_17 {dimension_numbers = #tpu.dot_dimension_numbers<[1], [0], [0], [1], [0, 0, 1, 1], [], []>} : vector<256x128xbf16>, vector<128x128xbf16>, vector<256x128xf32> -> vector<256x128xf32>
    %c2_18 = arith.constant 2 : index
    %c0_19 = arith.constant 0 : index
    %c0_20 = arith.constant 0 : index
    %24 = vector.load %arg3[%c2_18, %c0_19, %c0_20] : memref<3x1x128xf32, #tpu.memory_space<vmem>>, vector<1x1x128xf32>
    %25 = vector.shape_cast %24 : vector<1x1x128xf32> to vector<1x128xf32>
    %26 = vector.broadcast %25 : vector<1x128xf32> to vector<256x128xf32>
    %27 = arith.addf %23, %26 : vector<256x128xf32>
    %c0_21 = arith.constant 0 : index
    %c0_22 = arith.constant 0 : index
    %28 = vector.load %arg4[%c0_21, %c0_22] : memref<256x128xf32, #tpu.memory_space<vmem>>, vector<256x128xf32>
    tpu.vector_store %arg4[%c0_21, %c0_22], %27 {strides = array<i32>} : memref<256x128xf32, #tpu.memory_space<vmem>>, vector<256x128xf32>,
    return
  }
  func.func @transform_0(%arg0: i32) -> (i32, i32) {
    %c0_i32 = arith.constant 0 : i32
    %c0_i32_0 = arith.constant 0 : i32
    return %arg0, %c0_i32 : i32, i32
  }
  func.func @transform_1(%arg0: i32) -> (i32, i32, i32) {
    %c0_i32 = arith.constant 0 : i32
    %c0_i32_0 = arith.constant 0 : i32
    %c0_i32_1 = arith.constant 0 : i32
    %c0_i32_2 = arith.constant 0 : i32
    return %c0_i32, %c0_i32_0, %c0_i32_1 : i32, i32, i32
  }
  func.func @transform_2(%arg0: i32) -> (i32, i32, i32) {
    %c0_i32 = arith.constant 0 : i32
    %c0_i32_0 = arith.constant 0 : i32
    %c0_i32_1 = arith.constant 0 : i32
    %c0_i32_2 = arith.constant 0 : i32
    return %c0_i32, %c0_i32_0, %c0_i32_1 : i32, i32, i32
  }
  func.func @transform_3(%arg0: i32) -> (i32, i32) {
    %c0_i32 = arith.constant 0 : i32
    %c0_i32_0 = arith.constant 0 : i32
    return %arg0, %c0_i32 : i32, i32
  }
}

</mosaic_0001>

<llo_original>
// kernel: tpu_custom_call.1
$region0: #{tpu_custom_call.1}
  #allocation0 [shape = 'u32[]', space=smem, size = 0x4, offset = 0x4, fixed_abs, tag = 'smem constant byte address 0x4 - core index']
  #allocation1 [shape = 'u32[144,128]{1,0:T(1,128)}', space=vmem, size = 0x12000, scoped, tag = 'internal scratch']
  %s0 = inlined_call_operand.hbm [shape: bf16[512,128], index: 0, kind: input, shape index: {}]
  %s1 = inlined_call_operand.hbm [shape: bf16[3,128,128], index: 1, kind: input, shape index: {}]
  %s2 = inlined_call_operand.vmem [shape: f32[3,1,128], index: 2, kind: input, shape index: {}]
  %s3 = inlined_call_operand.hbm [shape: f32[512,128], index: 3, kind: output, shape index: {}]
  %s4 = sld [smem:[#allocation0]]
  $region53: #{tpu_custom_call.1} parent=0
    _
  %s6 = ssub.s32 1, %s4
  %s7 = scalar_select 0, %s6, %s4
  $region1: #{tpu_custom_call.1} parent=0
    #allocation2 [shape = 'u8[131072]{0}', space=vmem, size = 0x20000, scoped, tag = 'input window, operand 0']
    #allocation3 [shape = 's32[2]{0}', space=sflag, size = 0x8, scoped, tag = 'scoped memory for tpu_custom_call.1']
    #allocation4 [shape = 's32[2]{0}', space=sflag, size = 0x8, scoped, tag = 'scoped memory for tpu_custom_call.1']
    #allocation5 [shape = 'u8[98304]{0}', space=vmem, size = 0x18000, scoped, tag = 'input window, operand 1, single buffered']
    #allocation6 [shape = 's32[1]{0}', space=sflag, size = 0x4, scoped, tag = 'scoped memory for tpu_custom_call.1']
    #allocation7 [shape = 'u8[262144]{0}', space=vmem, size = 0x40000, scoped, tag = 'output window, operand 0']
    %8 = vsyncpa [#allocation3], 0
    %s9 = scalar_lea.sflag [#allocation3], 1
    %10 = vsyncpa %s9, 0
    %11 = vsyncpa [#allocation6], 0
    %12 = vsyncpa [#allocation4], 0
    %s13 = scalar_lea.sflag [#allocation4], 1
    %14 = vsyncpa %s13, 0
    loop: start=0, step=1, limit=4
    $region2: #{tpu_custom_call.1} parent=1 // loop_pre_header
      _
    $region3: #{tpu_custom_call.1} parent=1 // loop_header
      %s16 = sphi 0, %s20
      %p17 = scmp.ge.s32.totalorder %s16, 4
      %s26 = sphi 0, %s28
      %s29 = sphi 0, %s26
      %s30 = sphi 0, %s29
      %s46 = sphi 0, %s30
      %s50 = sphi 0, %s50
      %s52 = sphi 0, %s50
      %s53 = sphi 0, %s52
      %s67 = sphi 0, %s53
      %s71 = sphi 0, %s71
      %s73 = sphi 0, %s71
      %s74 = sphi 0, %s73
      %s88 = sphi 0, %s74
      %s94 = sphi 0, %s96
      %s97 = sphi 0, %s94
      %s98 = sphi 0, %s97
      %s114 = sphi 0, %s98
    $region4: #{tpu_custom_call.1} parent=1 // loop_header_branch
      %19 = sbr.rel (%p17) target = $region8
    $region5: #{tpu_custom_call.1} parent=1 // loop_body
      %s21 = ssub.s32 %s16, 1
      %s22 = ssub.s32 %s16, 2
      %s23 = sadd.s32 %s16, 1
      %s24 = ssub.s32 %s16, %s23
      %p25 = scmp.eq.s32.totalorder %s24, 0
      %s27 = sadd.s32 %s26, 1
      %s28 = scalar_select %p25, %s26, %s27
      %p31 = pneg %p25
      %p32 = scmp.eq.s32.totalorder %s16, 1
      %p33 = por %p31, %p32
      %p34 = scmp.ne.s32.totalorder %s26, %s29
      %p35 = scmp.eq.s32.totalorder %s16, 0
      %p36 = por %p34, %p35
      %p37 = scmp.ne.s32.totalorder %s26, %s29
      %p38 = scmp.eq.s32.totalorder %s21, 1
      %p39 = por %p37, %p38
      %p40 = scmp.ne.s32.totalorder %s29, %s30
      %p41 = scmp.eq.s32.totalorder %s21, 0
      %p42 = por %p40, %p41
      %p43 = scmp.ne.s32.totalorder %s29, %s30
      %p44 = scmp.eq.s32.totalorder %s22, 1
      %p45 = por %p43, %p44
      %p47 = scmp.ne.s32.totalorder %s30, %s46
      %p48 = scmp.eq.s32.totalorder %s22, 0
      %p49 = por %p47, %p48
      %s51 = sadd.s32 %s50, 1
      %p54 = scmp.eq.s32.totalorder %s16, 1
      %p55 = scmp.ne.s32.totalorder %s50, %s52
      %p56 = scmp.eq.s32.totalorder %s16, 0
      %p57 = por %p55, %p56
      %p58 = scmp.ne.s32.totalorder %s50, %s52
      %p59 = scmp.eq.s32.totalorder %s21, 1
      %p60 = por %p58, %p59
      %p61 = scmp.ne.s32.totalorder %s52, %s53
      %p62 = scmp.eq.s32.totalorder %s21, 0
      %p63 = por %p61, %p62
      %p64 = scmp.ne.s32.totalorder %s52, %s53
      %p65 = scmp.eq.s32.totalorder %s22, 1
      %p66 = por %p64, %p65
      %p68 = scmp.ne.s32.totalorder %s53, %s67
      %p69 = scmp.eq.s32.totalorder %s22, 0
      %p70 = por %p68, %p69
      %s72 = sadd.s32 %s71, 1
      %p75 = scmp.eq.s32.totalorder %s16, 1
      %p76 = scmp.ne.s32.totalorder %s71, %s73
      %p77 = scmp.eq.s32.totalorder %s16, 0
      %p78 = por %p76, %p77
      %p79 = scmp.ne.s32.totalorder %s71, %s73
      %p80 = scmp.eq.s32.totalorder %s21, 1
      %p81 = por %p79, %p80
      %p82 = scmp.ne.s32.totalorder %s73, %s74
      %p83 = scmp.eq.s32.totalorder %s21, 0
      %p84 = por %p82, %p83
      %p85 = scmp.ne.s32.totalorder %s73, %s74
      %p86 = scmp.eq.s32.totalorder %s22, 1
      %p87 = por %p85, %p86
      %p89 = scmp.ne.s32.totalorder %s74, %s88
      %p90 = scmp.eq.s32.totalorder %s22, 0
      %p91 = por %p89, %p90
      %s92 = ssub.s32 %s16, %s23
      %p93 = scmp.eq.s32.totalorder %s92, 0
      %s95 = sadd.s32 %s94, 1
      %s96 = scalar_select %p93, %s94, %s95
      %p99 = pneg %p93
      %p100 = scmp.eq.s32.totalorder %s16, 1
      %p101 = por %p99, %p100
      %p102 = scmp.ne.s32.totalorder %s94, %s97
      %p103 = scmp.eq.s32.totalorder %s16, 0
      %p104 = por %p102, %p103
      %p105 = scmp.ne.s32.totalorder %s94, %s97
      %p106 = scmp.eq.s32.totalorder %s21, 1
      %p107 = por %p105, %p106
      %p108 = scmp.ne.s32.totalorder %s97, %s98
      %p109 = scmp.eq.s32.totalorder %s21, 0
      %p110 = por %p108, %p109
      %p111 = scmp.ne.s32.totalorder %s97, %s98
      %p112 = scmp.eq.s32.totalorder %s22, 1
      %p113 = por %p111, %p112
      %p115 = scmp.ne.s32.totalorder %s98, %s114
      %p116 = scmp.eq.s32.totalorder %s22, 0
      %p117 = por %p115, %p116
      %p118 = scmp.le.s32.totalorder 1, %s16
      %p119 = scmp.lt.s32.totalorder %s16, 3
      %p120 = pnand %p118, %p119
      %p121 = pneg %p120
      // Predicated region
      $region9: #{tpu_custom_call.1} parent=5 // pred_check
        _
      $region10: #{tpu_custom_call.1} parent=5 // pred_check_branch
        %123 = sbr.rel (%p120) target = $region12
      $region11: #{tpu_custom_call.1} parent=5 // pred_region
        %s124 = ssub.s32 %s16, 1
        // Predicated region
        $region13: #{tpu_custom_call.1} parent=11 // pred_check
          %p125 = pneg %p63
        $region14: #{tpu_custom_call.1} parent=11 // pred_check_branch
          %127 = sbr.rel (%p125) target = $region16
        $region15: #{tpu_custom_call.1} parent=11 // pred_region
          %s129 = ssub.s32 3072, 3072
          %130 = vsyncadd [#allocation6], %s129
          %s131 = sshll.u32 [#allocation5], 4
          %s132 = int_to_ptr.vmem [resolvable:$true] %s131
          %137 = dma.hbm_to_vmem [thread:$0]  %s1, 3072, %s132, [#allocation6], 64, 64, 4
        $region16: #{tpu_custom_call.1} parent=11 // pred_fallthru
          _
        // Predicated region
        $region17: #{tpu_custom_call.1} parent=11 // pred_check
          %p138 = pneg %p84
        $region18: #{tpu_custom_call.1} parent=11 // pred_check_branch
          %140 = sbr.rel (%p138) target = $region20
        $region19: #{tpu_custom_call.1} parent=11 // pred_region
          _
        $region20: #{tpu_custom_call.1} parent=11 // pred_fallthru
          _
      $region12: #{tpu_custom_call.1} parent=5 // pred_fallthru
        _
      %p141 = scmp.lt.s32.totalorder %s16, 2
      // Predicated region
      $region21: #{tpu_custom_call.1} parent=5 // pred_check
        %p142 = pneg %p141
      $region22: #{tpu_custom_call.1} parent=5 // pred_check_branch
        %144 = sbr.rel (%p142) target = $region24
      $region23: #{tpu_custom_call.1} parent=5 // pred_region
        // Predicated region
        $region25: #{tpu_custom_call.1} parent=23 // pred_check
          %p145 = pneg %p36
        $region26: #{tpu_custom_call.1} parent=23 // pred_check_branch
          %147 = sbr.rel (%p145) target = $region28
        $region27: #{tpu_custom_call.1} parent=23 // pred_region
          %s148 = sand.u32 %s26, 1
          %s149 = scalar_lea.sflag [#allocation3], %s148
          %s150 = sand.u32 %s26, 1
          %s151 = smul.addr %s150, 128
          %s152 = scalar_lea.vmem [#allocation2], %s151
          %s153 = smul.u32 32, %s16
          %s155 = ssub.s32 2048, 2048
          %156 = vsyncadd %s149, %s155
          %s157 = smul.addr %s153, 64
          %s158 = scalar_lea.hbm %s0, %s157
          %s159 = sshll.u32 %s152, 4
          %s160 = int_to_ptr.vmem [resolvable:$true] %s159
          %165 = dma.hbm_to_vmem [thread:$0]  %s158, 2048, %s160, %s149, 64, 64, 4
        $region28: #{tpu_custom_call.1} parent=23 // pred_fallthru
          _
      $region24: #{tpu_custom_call.1} parent=5 // pred_fallthru
        _
      %p166 = scmp.le.s32.totalorder 1, %s16
      %p167 = scmp.lt.s32.totalorder %s16, 3
      %p168 = pnand %p166, %p167
      %p169 = pneg %p168
      // Predicated region
      $region29: #{tpu_custom_call.1} parent=5 // pred_check
        _
      $region30: #{tpu_custom_call.1} parent=5 // pred_check_branch
        %171 = sbr.rel (%p168) target = $region32
      $region31: #{tpu_custom_call.1} parent=5 // pred_region
        %s172 = ssub.s32 %s16, 1
        %s173 = sand.u32 %s29, 1
        %s174 = scalar_lea.sflag [#allocation3], %s173
        %s175 = sand.u32 %s29, 1
        %s176 = smul.addr %s175, 128
        %s177 = scalar_lea.vmem [#allocation2], %s176
        // Predicated region
        $region33: #{tpu_custom_call.1} parent=31 // pred_check
          %p178 = pneg %p42
        $region34: #{tpu_custom_call.1} parent=31 // pred_check_branch
          %180 = sbr.rel (%p178) target = $region36
        $region35: #{tpu_custom_call.1} parent=31 // pred_region
          %181 = dma.done %s174, 2048
        $region36: #{tpu_custom_call.1} parent=31 // pred_fallthru
          _
        // Predicated region
        $region37: #{tpu_custom_call.1} parent=31 // pred_check
          %p182 = pneg %p63
        $region38: #{tpu_custom_call.1} parent=31 // pred_check_branch
          %184 = sbr.rel (%p182) target = $region40
        $region39: #{tpu_custom_call.1} parent=31 // pred_region
          %185 = dma.done [#allocation6], 3072
        $region40: #{tpu_custom_call.1} parent=31 // pred_fallthru
          _
        %s186 = sand.u32 %s29, 1
        %s187 = scalar_lea.sflag [#allocation3], %s186
        %s188 = sand.u32 %s29, 1
        %s189 = smul.addr %s188, 128
        %s190 = scalar_lea.vmem [#allocation2], %s189
        %p191 = pneg %p42
        %p192 = pneg %p39
        %p193 = pneg %p63
        %p194 = pneg %p60
        %p195 = pneg %p84
        %p196 = pneg %p81
        %p197 = pneg %p110
        %p198 = pneg %p107
        %s199 = sand.u32 %s97, 1
        %s200 = scalar_lea.sflag [#allocation4], %s199
        %s201 = sand.u32 %s97, 1
        %s202 = smul.addr %s201, 256
        %s203 = scalar_lea.vmem [#allocation7], %s202
        %s204 = smul.u32 32, %s21
        %s205 = smul.u32 32, %s21
        %v207 = vld [vmem:[%s177] sm:$0xf]
        %v208 = vld [vmem:[%s177 + $0x4] sm:$0xf]
        %v209 = vld [vmem:[%s177 + $0x8] sm:$0xf]
        %v210 = vld [vmem:[%s177 + $0xc] sm:$0xf]
        %v211 = vld [vmem:[%s177 + $0x10] sm:$0xf]
        %v212 = vld [vmem:[%s177 + $0x14] sm:$0xf]
        %v213 = vld [vmem:[%s177 + $0x18] sm:$0xf]
        %v214 = vld [vmem:[%s177 + $0x1c] sm:$0xf]
        %v215 = vld [vmem:[%s177 + $0x20] sm:$0xf]
        %v216 = vld [vmem:[%s177 + $0x24] sm:$0xf]
        %v217 = vld [vmem:[%s177 + $0x28] sm:$0xf]
        %v218 = vld [vmem:[%s177 + $0x2c] sm:$0xf]
        %v219 = vld [vmem:[%s177 + $0x30] sm:$0xf]
        %v220 = vld [vmem:[%s177 + $0x34] sm:$0xf]
        %v221 = vld [vmem:[%s177 + $0x38] sm:$0xf]
        %v222 = vld [vmem:[%s177 + $0x3c] sm:$0xf]
        %v223 = vld [vmem:[%s177 + $0x40] sm:$0xf]
        %v224 = vld [vmem:[%s177 + $0x44] sm:$0xf]
        %v225 = vld [vmem:[%s177 + $0x48] sm:$0xf]
        %v226 = vld [vmem:[%s177 + $0x4c] sm:$0xf]
        %v227 = vld [vmem:[%s177 + $0x50] sm:$0xf]
        %v228 = vld [vmem:[%s177 + $0x54] sm:$0xf]
        %v229 = vld [vmem:[%s177 + $0x58] sm:$0xf]
        %v230 = vld [vmem:[%s177 + $0x5c] sm:$0xf]
        %v231 = vld [vmem:[%s177 + $0x60] sm:$0xf]
        %v232 = vld [vmem:[%s177 + $0x64] sm:$0xf]
        %v233 = vld [vmem:[%s177 + $0x68] sm:$0xf]
        %v234 = vld [vmem:[%s177 + $0x6c] sm:$0xf]
        %v235 = vld [vmem:[%s177 + $0x70] sm:$0xf]
        %v236 = vld [vmem:[%s177 + $0x74] sm:$0xf]
        %v237 = vld [vmem:[%s177 + $0x78] sm:$0xf]
        %v238 = vld [vmem:[%s177 + $0x7c] sm:$0xf]
        %v239 = vld [vmem:[#allocation5] sm:$0xf]
        %v240 = vld [vmem:[#allocation5 + $0x4] sm:$0xf]
        %v241 = vld [vmem:[#allocation5 + $0x8] sm:$0xf]
        %v242 = vld [vmem:[#allocation5 + $0xc] sm:$0xf]
        %v243 = vld [vmem:[#allocation5 + $0x10] sm:$0xf]
        %v244 = vld [vmem:[#allocation5 + $0x14] sm:$0xf]
        %v245 = vld [vmem:[#allocation5 + $0x18] sm:$0xf]
        %v246 = vld [vmem:[#allocation5 + $0x1c] sm:$0xf]
        %v247 = vld [vmem:[#allocation5 + $0x20] sm:$0xf]
        %v248 = vld [vmem:[#allocation5 + $0x24] sm:$0xf]
        %v249 = vld [vmem:[#allocation5 + $0x28] sm:$0xf]
        %v250 = vld [vmem:[#allocation5 + $0x2c] sm:$0xf]
        %v251 = vld [vmem:[#allocation5 + $0x30] sm:$0xf]
        %v252 = vld [vmem:[#allocation5 + $0x34] sm:$0xf]
        %v253 = vld [vmem:[#allocation5 + $0x38] sm:$0xf]
        %v254 = vld [vmem:[#allocation5 + $0x3c] sm:$0xf]
        %v255 = vld [vmem:[%s2] sm:$0x1]
        %v257 = vlaneseq
        %v258 = vshrl.u32 %v257, 7
        %v259 = vsub.s32 0, %v258
        %v260 = vrot.slane %v255, %v259
        %v294 = vunpack.c.l.b16 %v207
        %v295 = vunpack.c.l.b16 %v208
        %v296 = vunpack.c.l.b16 %v209
        %v297 = vunpack.c.l.b16 %v210
        %v298 = vunpack.c.l.b16 %v211
        %v299 = vunpack.c.l.b16 %v212
        %v300 = vunpack.c.l.b16 %v213
        %v301 = vunpack.c.l.b16 %v214
        %v302 = vunpack.c.l.b16 %v215
        %v303 = vunpack.c.l.b16 %v216
        %v304 = vunpack.c.l.b16 %v217
        %v305 = vunpack.c.l.b16 %v218
        %v306 = vunpack.c.l.b16 %v219
        %v307 = vunpack.c.l.b16 %v220
        %v308 = vunpack.c.l.b16 %v221
        %v309 = vunpack.c.l.b16 %v222
        %v310 = vunpack.c.l.b16 %v223
        %v311 = vunpack.c.l.b16 %v224
        %v312 = vunpack.c.l.b16 %v225
        %v313 = vunpack.c.l.b16 %v226
        %v314 = vunpack.c.l.b16 %v227
        %v315 = vunpack.c.l.b16 %v228
        %v316 = vunpack.c.l.b16 %v229
        %v317 = vunpack.c.l.b16 %v230
        %v318 = vunpack.c.l.b16 %v231
        %v319 = vunpack.c.l.b16 %v232
        %v320 = vunpack.c.l.b16 %v233
        %v321 = vunpack.c.l.b16 %v234
        %v322 = vunpack.c.l.b16 %v235
        %v323 = vunpack.c.l.b16 %v236
        %v324 = vunpack.c.l.b16 %v237
        %v325 = vunpack.c.l.b16 %v238
        %v326 = vpack.c.b16 %v295, %v294
        %v327 = vpack.c.b16 %v297, %v296
        %v328 = vpack.c.b16 %v299, %v298
        %v329 = vpack.c.b16 %v301, %v300
        %v330 = vpack.c.b16 %v303, %v302
        %v331 = vpack.c.b16 %v305, %v304
        %v332 = vpack.c.b16 %v307, %v306
        %v333 = vpack.c.b16 %v309, %v308
        %v334 = vpack.c.b16 %v311, %v310
        %v335 = vpack.c.b16 %v313, %v312
        %v336 = vpack.c.b16 %v315, %v314
        %v337 = vpack.c.b16 %v317, %v316
        %v338 = vpack.c.b16 %v319, %v318
        %v339 = vpack.c.b16 %v321, %v320
        %v340 = vpack.c.b16 %v323, %v322
        %v341 = vpack.c.b16 %v325, %v324
        %v374 = vunpack.c.l.b16 %v239
        %v375 = vunpack.c.l.b16 %v240
        %v376 = vunpack.c.l.b16 %v241
        %v377 = vunpack.c.l.b16 %v242
        %v378 = vunpack.c.l.b16 %v243
        %v379 = vunpack.c.l.b16 %v244
        %v380 = vunpack.c.l.b16 %v245
        %v381 = vunpack.c.l.b16 %v246
        %v382 = vunpack.c.l.b16 %v247
        %v383 = vunpack.c.l.b16 %v248
        %v384 = vunpack.c.l.b16 %v249
        %v385 = vunpack.c.l.b16 %v250
        %v386 = vunpack.c.l.b16 %v251
        %v387 = vunpack.c.l.b16 %v252
        %v388 = vunpack.c.l.b16 %v253
        %v389 = vunpack.c.l.b16 %v254
        %v390 = vpack.c.b16 %v375, %v374
        %v391 = vpack.c.b16 %v377, %v376
        %v392 = vpack.c.b16 %v379, %v378
        %v393 = vpack.c.b16 %v381, %v380
        %v394 = vpack.c.b16 %v383, %v382
        %v395 = vpack.c.b16 %v385, %v384
        %v396 = vpack.c.b16 %v387, %v386
        %v397 = vpack.c.b16 %v389, %v388
        %406 = vmatprep.subr.bf16.mxu0 0
        %407 = vmatpush1.bf16.msra.mxu0 %v390
        %408 = vmatprep.subr.bf16.mxu0 0
        %409 = vmatpush1.bf16.msra.mxu0 %v391
        %410 = vmatprep.subr.bf16.mxu0 0
        %411 = vmatpush1.bf16.msra.mxu0 %v392
        %412 = vmatprep.subr.bf16.mxu0 0
        %413 = vmatpush1.bf16.msra.mxu0 %v393
        %414 = vmatprep.subr.bf16.mxu0 0
        %415 = vmatpush1.bf16.msra.mxu0 %v394
        %416 = vmatprep.subr.bf16.mxu0 0
        %417 = vmatpush1.bf16.msra.mxu0 %v395
        %418 = vmatprep.subr.bf16.mxu0 0
        %419 = vmatpush1.bf16.msra.mxu0 %v396
        %420 = vmatprep.subr.bf16.mxu0 0
        %421 = vmatpush1.bf16.msra.mxu0 %v397
        %422 = vmatprep.subr.bf16.mxu0 0
        %423 = vmatpush1.bf16.msra.mxu0 0
        %424 = vmatprep.subr.bf16.mxu0 0
        %425 = vmatpush1.bf16.msra.mxu0 0
        %426 = vmatprep.subr.bf16.mxu0 0
        %427 = vmatpush1.bf16.msra.mxu0 0
        %428 = vmatprep.subr.bf16.mxu0 0
        %429 = vmatpush1.bf16.msra.mxu0 0
        %430 = vmatprep.subr.bf16.mxu0 0
        %431 = vmatpush1.bf16.msra.mxu0 0
        %432 = vmatprep.subr.bf16.mxu0 0
        %433 = vmatpush1.bf16.msra.mxu0 0
        %434 = vmatprep.subr.bf16.mxu0 0
        %435 = vmatpush1.bf16.msra.mxu0 0
        %436 = vmatprep.subr.bf16.mxu0 0
        %437 = vmatpush1.bf16.msra.mxu0 0
        %438 = vmatprep.mubr.bf16.mxu0 0
        %439 = vmatmul.mubr.bf16.gmra.mrb[0].mxu0 %v326
        %v440 = vpop.f32.mrb[0].mxu0
        %v441 = vadd.f32 %v260, %v440
        %v442 = vpop.f32.mrb[0].mxu0
        %v443 = vpop.f32.mrb[0].mxu0
        %v444 = vadd.f32 %v260, %v443
        %v445 = vpop.f32.mrb[0].mxu0
        %446 = vmatprep.mubr.bf16.mxu0 0
        %447 = vmatmul.mubr.bf16.gmra.mrb[0].mxu0 %v327
        %v448 = vpop.f32.mrb[0].mxu0
        %v449 = vadd.f32 %v260, %v448
        %v450 = vpop.f32.mrb[0].mxu0
        %v451 = vpop.f32.mrb[0].mxu0
        %v452 = vadd.f32 %v260, %v451
        %v453 = vpop.f32.mrb[0].mxu0
        %454 = vmatprep.mubr.bf16.mxu0 0
        %455 = vmatmul.mubr.bf16.gmra.mrb[0].mxu0 %v328
        %v456 = vpop.f32.mrb[0].mxu0
        %v457 = vadd.f32 %v260, %v456
        %v458 = vpop.f32.mrb[0].mxu0
        %v459 = vpop.f32.mrb[0].mxu0
        %v460 = vadd.f32 %v260, %v459
        %v461 = vpop.f32.mrb[0].mxu0
        %462 = vmatprep.mubr.bf16.mxu0 0
        %463 = vmatmul.mubr.bf16.gmra.mrb[0].mxu0 %v329
        %v464 = vpop.f32.mrb[0].mxu0
        %v465 = vadd.f32 %v260, %v464
        %v466 = vpop.f32.mrb[0].mxu0
        %v467 = vpop.f32.mrb[0].mxu0
        %v468 = vadd.f32 %v260, %v467
        %v469 = vpop.f32.mrb[0].mxu0
        %470 = vmatprep.mubr.bf16.mxu0 0
        %471 = vmatmul.mubr.bf16.gmra.mrb[0].mxu0 %v330
        %v472 = vpop.f32.mrb[0].mxu0
        %v473 = vadd.f32 %v260, %v472
        %v474 = vpop.f32.mrb[0].mxu0
        %v475 = vpop.f32.mrb[0].mxu0
        %v476 = vadd.f32 %v260, %v475
        %v477 = vpop.f32.mrb[0].mxu0
        %478 = vmatprep.mubr.bf16.mxu0 0
        %479 = vmatmul.mubr.bf16.gmra.mrb[0].mxu0 %v331
        %v480 = vpop.f32.mrb[0].mxu0
        %v481 = vadd.f32 %v260, %v480
        %v482 = vpop.f32.mrb[0].mxu0
        %v483 = vpop.f32.mrb[0].mxu0
        %v484 = vadd.f32 %v260, %v483
        %v485 = vpop.f32.mrb[0].mxu0
        %486 = vmatprep.mubr.bf16.mxu0 0
        %487 = vmatmul.mubr.bf16.gmra.mrb[0].mxu0 %v332
        %v488 = vpop.f32.mrb[0].mxu0
        %v489 = vadd.f32 %v260, %v488
        %v490 = vpop.f32.mrb[0].mxu0
        %v491 = vpop.f32.mrb[0].mxu0
        %v492 = vadd.f32 %v260, %v491
        %v493 = vpop.f32.mrb[0].mxu0
        %494 = vmatprep.mubr.bf16.mxu0 0
        %495 = vmatmul.mubr.bf16.gmra.mrb[0].mxu0 %v333
        %v496 = vpop.f32.mrb[0].mxu0
        %v497 = vadd.f32 %v260, %v496
        %v498 = vpop.f32.mrb[0].mxu0
        %v499 = vpop.f32.mrb[0].mxu0
        %v500 = vadd.f32 %v260, %v499
        %v501 = vpop.f32.mrb[0].mxu0
        %502 = vmatprep.mubr.bf16.mxu0 0
        %503 = vmatmul.mubr.bf16.gmra.mrb[0].mxu0 %v334
        %v504 = vpop.f32.mrb[0].mxu0
        %v505 = vadd.f32 %v260, %v504
        %v506 = vpop.f32.mrb[0].mxu0
        %v507 = vpop.f32.mrb[0].mxu0
        %v508 = vadd.f32 %v260, %v507
        %v509 = vpop.f32.mrb[0].mxu0
        %510 = vmatprep.mubr.bf16.mxu0 0
        %511 = vmatmul.mubr.bf16.gmra.mrb[0].mxu0 %v335
        %v512 = vpop.f32.mrb[0].mxu0
        %v513 = vadd.f32 %v260, %v512
        %v514 = vpop.f32.mrb[0].mxu0
        %v515 = vpop.f32.mrb[0].mxu0
        %v516 = vadd.f32 %v260, %v515
        %v517 = vpop.f32.mrb[0].mxu0
        %518 = vmatprep.mubr.bf16.mxu0 0
        %519 = vmatmul.mubr.bf16.gmra.mrb[0].mxu0 %v336
        %v520 = vpop.f32.mrb[0].mxu0
        %v521 = vadd.f32 %v260, %v520
        %v522 = vpop.f32.mrb[0].mxu0
        %v523 = vpop.f32.mrb[0].mxu0
        %v524 = vadd.f32 %v260, %v523
        %v525 = vpop.f32.mrb[0].mxu0
        %526 = vmatprep.mubr.bf16.mxu0 0
        %527 = vmatmul.mubr.bf16.gmra.mrb[0].mxu0 %v337
        %v528 = vpop.f32.mrb[0].mxu0
        %v529 = vadd.f32 %v260, %v528
        %v530 = vpop.f32.mrb[0].mxu0
        %v531 = vpop.f32.mrb[0].mxu0
        %v532 = vadd.f32 %v260, %v531
        %v533 = vpop.f32.mrb[0].mxu0
        %534 = vmatprep.mubr.bf16.mxu0 0
        %535 = vmatmul.mubr.bf16.gmra.mrb[0].mxu0 %v338
        %v536 = vpop.f32.mrb[0].mxu0
        %v537 = vadd.f32 %v260, %v536
        %v538 = vpop.f32.mrb[0].mxu0
        %v539 = vpop.f32.mrb[0].mxu0
        %v540 = vadd.f32 %v260, %v539
        %v541 = vpop.f32.mrb[0].mxu0
        %542 = vmatprep.mubr.bf16.mxu0 0
        %543 = vmatmul.mubr.bf16.gmra.mrb[0].mxu0 %v339
        %v544 = vpop.f32.mrb[0].mxu0
        %v545 = vadd.f32 %v260, %v544
        %v546 = vpop.f32.mrb[0].mxu0
        %v547 = vpop.f32.mrb[0].mxu0
        %v548 = vadd.f32 %v260, %v547
        %v549 = vpop.f32.mrb[0].mxu0
        %550 = vmatprep.mubr.bf16.mxu0 0
        %551 = vmatmul.mubr.bf16.gmra.mrb[0].mxu0 %v340
        %v552 = vpop.f32.mrb[0].mxu0
        %v553 = vadd.f32 %v260, %v552
        %v554 = vpop.f32.mrb[0].mxu0
        %v555 = vpop.f32.mrb[0].mxu0
        %v556 = vadd.f32 %v260, %v555
        %v557 = vpop.f32.mrb[0].mxu0
        %558 = vmatprep.mubr.bf16.mxu0 0
        %559 = vmatmul.mubr.bf16.gmra.mrb[0].mxu0 %v341
        %v560 = vpop.f32.mrb[0].mxu0
        %v561 = vadd.f32 %v260, %v560
        %v562 = vpop.f32.mrb[0].mxu0
        %v563 = vpop.f32.mrb[0].mxu0
        %v564 = vadd.f32 %v260, %v563
        %v565 = vpop.f32.mrb[0].mxu0
        %566 = vdwg.mxu0
        %v567 = vmax.f32 %v441, 0.0
        %v568 = vmax.f32 %v444, 0.0
        %v569 = vmax.f32 %v449, 0.0
        %v570 = vmax.f32 %v452, 0.0
        %v571 = vmax.f32 %v457, 0.0
        %v572 = vmax.f32 %v460, 0.0
        %v573 = vmax.f32 %v465, 0.0
        %v574 = vmax.f32 %v468, 0.0
        %v575 = vmax.f32 %v473, 0.0
        %v576 = vmax.f32 %v476, 0.0
        %v577 = vmax.f32 %v481, 0.0
        %v578 = vmax.f32 %v484, 0.0
        %v579 = vmax.f32 %v489, 0.0
        %v580 = vmax.f32 %v492, 0.0
        %v581 = vmax.f32 %v497, 0.0
        %v582 = vmax.f32 %v500, 0.0
        %v583 = vmax.f32 %v505, 0.0
        %v584 = vmax.f32 %v508, 0.0
        %v585 = vmax.f32 %v513, 0.0
        %v586 = vmax.f32 %v516, 0.0
        %v587 = vmax.f32 %v521, 0.0
        %v588 = vmax.f32 %v524, 0.0
        %v589 = vmax.f32 %v529, 0.0
        %v590 = vmax.f32 %v532, 0.0
        %v591 = vmax.f32 %v537, 0.0
        %v592 = vmax.f32 %v540, 0.0
        %v593 = vmax.f32 %v545, 0.0
        %v594 = vmax.f32 %v548, 0.0
        %v595 = vmax.f32 %v553, 0.0
        %v596 = vmax.f32 %v556, 0.0
        %v597 = vmax.f32 %v561, 0.0
        %v598 = vmax.f32 %v564, 0.0
        %v599 = vpack.c.bf16 %v568, %v567
        %v600 = vpack.c.bf16 %v570, %v569
        %v601 = vpack.c.bf16 %v572, %v571
        %v602 = vpack.c.bf16 %v574, %v573
        %v603 = vpack.c.bf16 %v576, %v575
        %v604 = vpack.c.bf16 %v578, %v577
        %v605 = vpack.c.bf16 %v580, %v579
        %v606 = vpack.c.bf16 %v582, %v581
        %v607 = vpack.c.bf16 %v584, %v583
        %v608 = vpack.c.bf16 %v586, %v585
        %v609 = vpack.c.bf16 %v588, %v587
        %v610 = vpack.c.bf16 %v590, %v589
        %v611 = vpack.c.bf16 %v592, %v591
        %v612 = vpack.c.bf16 %v594, %v593
        %v613 = vpack.c.bf16 %v596, %v595
        %v614 = vpack.c.bf16 %v598, %v597
        %s615 = scalar_lea.vmem [#allocation5], 64
        %v616 = vld [vmem:[%s615] sm:$0xf]
        %v617 = vld [vmem:[%s615 + $0x4] sm:$0xf]
        %v618 = vld [vmem:[%s615 + $0x8] sm:$0xf]
        %v619 = vld [vmem:[%s615 + $0xc] sm:$0xf]
        %v620 = vld [vmem:[%s615 + $0x10] sm:$0xf]
        %v621 = vld [vmem:[%s615 + $0x14] sm:$0xf]
        %v622 = vld [vmem:[%s615 + $0x18] sm:$0xf]
        %v623 = vld [vmem:[%s615 + $0x1c] sm:$0xf]
        %v624 = vld [vmem:[%s615 + $0x20] sm:$0xf]
        %v625 = vld [vmem:[%s615 + $0x24] sm:$0xf]
        %v626 = vld [vmem:[%s615 + $0x28] sm:$0xf]
        %v627 = vld [vmem:[%s615 + $0x2c] sm:$0xf]
        %v628 = vld [vmem:[%s615 + $0x30] sm:$0xf]
        %v629 = vld [vmem:[%s615 + $0x34] sm:$0xf]
        %v630 = vld [vmem:[%s615 + $0x38] sm:$0xf]
        %v631 = vld [vmem:[%s615 + $0x3c] sm:$0xf]
        %s632 = scalar_lea.vmem %s2, 1
        %v633 = vld [vmem:[%s632] sm:$0x1]
        %v635 = vlaneseq
        %v636 = vshrl.u32 %v635, 7
        %v637 = vsub.s32 0, %v636
        %v638 = vrot.slane %v633, %v637
        %v656 = vunpack.c.l.b16 %v616
        %v657 = vunpack.c.l.b16 %v617
        %v658 = vunpack.c.l.b16 %v618
        %v659 = vunpack.c.l.b16 %v619
        %v660 = vunpack.c.l.b16 %v620
        %v661 = vunpack.c.l.b16 %v621
        %v662 = vunpack.c.l.b16 %v622
        %v663 = vunpack.c.l.b16 %v623
        %v664 = vunpack.c.l.b16 %v624
        %v665 = vunpack.c.l.b16 %v625
        %v666 = vunpack.c.l.b16 %v626
        %v667 = vunpack.c.l.b16 %v627
        %v668 = vunpack.c.l.b16 %v628
        %v669 = vunpack.c.l.b16 %v629
        %v670 = vunpack.c.l.b16 %v630
        %v671 = vunpack.c.l.b16 %v631
        %v672 = vpack.c.b16 %v657, %v656
        %v673 = vpack.c.b16 %v659, %v658
        %v674 = vpack.c.b16 %v661, %v660
        %v675 = vpack.c.b16 %v663, %v662
        %v676 = vpack.c.b16 %v665, %v664
        %v677 = vpack.c.b16 %v667, %v666
        %v678 = vpack.c.b16 %v669, %v668
        %v679 = vpack.c.b16 %v671, %v670
        %688 = vmatprep.subr.bf16.mxu0 0
        %689 = vmatpush1.bf16.msra.mxu0 %v672
        %690 = vmatprep.subr.bf16.mxu0 0
        %691 = vmatpush1.bf16.msra.mxu0 %v673
        %692 = vmatprep.subr.bf16.mxu0 0
        %693 = vmatpush1.bf16.msra.mxu0 %v674
        %694 = vmatprep.subr.bf16.mxu0 0
        %695 = vmatpush1.bf16.msra.mxu0 %v675
        %696 = vmatprep.subr.bf16.mxu0 0
        %697 = vmatpush1.bf16.msra.mxu0 %v676
        %698 = vmatprep.subr.bf16.mxu0 0
        %699 = vmatpush1.bf16.msra.mxu0 %v677
        %700 = vmatprep.subr.bf16.mxu0 0
        %701 = vmatpush1.bf16.msra.mxu0 %v678
        %702 = vmatprep.subr.bf16.mxu0 0
        %703 = vmatpush1.bf16.msra.mxu0 %v679
        %704 = vmatprep.subr.bf16.mxu0 0
        %705 = vmatpush1.bf16.msra.mxu0 0
        %706 = vmatprep.subr.bf16.mxu0 0
        %707 = vmatpush1.bf16.msra.mxu0 0
        %708 = vmatprep.subr.bf16.mxu0 0
        %709 = vmatpush1.bf16.msra.mxu0 0
        %710 = vmatprep.subr.bf16.mxu0 0
        %711 = vmatpush1.bf16.msra.mxu0 0
        %712 = vmatprep.subr.bf16.mxu0 0
        %713 = vmatpush1.bf16.msra.mxu0 0
        %714 = vmatprep.subr.bf16.mxu0 0
        %715 = vmatpush1.bf16.msra.mxu0 0
        %716 = vmatprep.subr.bf16.mxu0 0
        %717 = vmatpush1.bf16.msra.mxu0 0
        %718 = vmatprep.subr.bf16.mxu0 0
        %719 = vmatpush1.bf16.msra.mxu0 0
        %720 = vmatprep.mubr.bf16.mxu0 0
        %721 = vmatmul.mubr.bf16.gmra.mrb[0].mxu0 %v599
        %v722 = vpop.f32.mrb[0].mxu0
        %v723 = vadd.f32 %v638, %v722
        %v724 = vpop.f32.mrb[0].mxu0
        %v725 = vpop.f32.mrb[0].mxu0
        %v726 = vadd.f32 %v638, %v725
        %v727 = vpop.f32.mrb[0].mxu0
        %728 = vmatprep.mubr.bf16.mxu0 0
        %729 = vmatmul.mubr.bf16.gmra.mrb[0].mxu0 %v600
        %v730 = vpop.f32.mrb[0].mxu0
        %v731 = vadd.f32 %v638, %v730
        %v732 = vpop.f32.mrb[0].mxu0
        %v733 = vpop.f32.mrb[0].mxu0
        %v734 = vadd.f32 %v638, %v733
        %v735 = vpop.f32.mrb[0].mxu0
        %736 = vmatprep.mubr.bf16.mxu0 0
        %737 = vmatmul.mubr.bf16.gmra.mrb[0].mxu0 %v601
        %v738 = vpop.f32.mrb[0].mxu0
        %v739 = vadd.f32 %v638, %v738
        %v740 = vpop.f32.mrb[0].mxu0
        %v741 = vpop.f32.mrb[0].mxu0
        %v742 = vadd.f32 %v638, %v741
        %v743 = vpop.f32.mrb[0].mxu0
        %744 = vmatprep.mubr.bf16.mxu0 0
        %745 = vmatmul.mubr.bf16.gmra.mrb[0].mxu0 %v602
        %v746 = vpop.f32.mrb[0].mxu0
        %v747 = vadd.f32 %v638, %v746
        %v748 = vpop.f32.mrb[0].mxu0
        %v749 = vpop.f32.mrb[0].mxu0
        %v750 = vadd.f32 %v638, %v749
        %v751 = vpop.f32.mrb[0].mxu0
        %752 = vmatprep.mubr.bf16.mxu0 0
        %753 = vmatmul.mubr.bf16.gmra.mrb[0].mxu0 %v603
        %v754 = vpop.f32.mrb[0].mxu0
        %v755 = vadd.f32 %v638, %v754
        %v756 = vpop.f32.mrb[0].mxu0
        %v757 = vpop.f32.mrb[0].mxu0
        %v758 = vadd.f32 %v638, %v757
        %v759 = vpop.f32.mrb[0].mxu0
        %760 = vmatprep.mubr.bf16.mxu0 0
        %761 = vmatmul.mubr.bf16.gmra.mrb[0].mxu0 %v604
        %v762 = vpop.f32.mrb[0].mxu0
        %v763 = vadd.f32 %v638, %v762
        %v764 = vpop.f32.mrb[0].mxu0
        %v765 = vpop.f32.mrb[0].mxu0
        %v766 = vadd.f32 %v638, %v765
        %v767 = vpop.f32.mrb[0].mxu0
        %768 = vmatprep.mubr.bf16.mxu0 0
        %769 = vmatmul.mubr.bf16.gmra.mrb[0].mxu0 %v605
        %v770 = vpop.f32.mrb[0].mxu0
        %v771 = vadd.f32 %v638, %v770
        %v772 = vpop.f32.mrb[0].mxu0
        %v773 = vpop.f32.mrb[0].mxu0
        %v774 = vadd.f32 %v638, %v773
        %v775 = vpop.f32.mrb[0].mxu0
        %776 = vmatprep.mubr.bf16.mxu0 0
        %777 = vmatmul.mubr.bf16.gmra.mrb[0].mxu0 %v606
        %v778 = vpop.f32.mrb[0].mxu0
        %v779 = vadd.f32 %v638, %v778
        %v780 = vpop.f32.mrb[0].mxu0
        %v781 = vpop.f32.mrb[0].mxu0
        %v782 = vadd.f32 %v638, %v781
        %v783 = vpop.f32.mrb[0].mxu0
        %784 = vmatprep.mubr.bf16.mxu0 0
        %785 = vmatmul.mubr.bf16.gmra.mrb[0].mxu0 %v607
        %v786 = vpop.f32.mrb[0].mxu0
        %v787 = vadd.f32 %v638, %v786
        %v788 = vpop.f32.mrb[0].mxu0
        %v789 = vpop.f32.mrb[0].mxu0
        %v790 = vadd.f32 %v638, %v789
        %v791 = vpop.f32.mrb[0].mxu0
        %792 = vmatprep.mubr.bf16.mxu0 0
        %793 = vmatmul.mubr.bf16.gmra.mrb[0].mxu0 %v608
        %v794 = vpop.f32.mrb[0].mxu0
        %v795 = vadd.f32 %v638, %v794
        %v796 = vpop.f32.mrb[0].mxu0
        %v797 = vpop.f32.mrb[0].mxu0
        %v798 = vadd.f32 %v638, %v797
        %v799 = vpop.f32.mrb[0].mxu0
        %800 = vmatprep.mubr.bf16.mxu0 0
        %801 = vmatmul.mubr.bf16.gmra.mrb[0].mxu0 %v609
        %v802 = vpop.f32.mrb[0].mxu0
        %v803 = vadd.f32 %v638, %v802
        %v804 = vpop.f32.mrb[0].mxu0
        %v805 = vpop.f32.mrb[0].mxu0
        %v806 = vadd.f32 %v638, %v805
        %v807 = vpop.f32.mrb[0].mxu0
        %808 = vmatprep.mubr.bf16.mxu0 0
        %809 = vmatmul.mubr.bf16.gmra.mrb[0].mxu0 %v610
        %v810 = vpop.f32.mrb[0].mxu0
        %v811 = vadd.f32 %v638, %v810
        %v812 = vpop.f32.mrb[0].mxu0
        %v813 = vpop.f32.mrb[0].mxu0
        %v814 = vadd.f32 %v638, %v813
        %v815 = vpop.f32.mrb[0].mxu0
        %816 = vmatprep.mubr.bf16.mxu0 0
        %817 = vmatmul.mubr.bf16.gmra.mrb[0].mxu0 %v611
        %v818 = vpop.f32.mrb[0].mxu0
        %v819 = vadd.f32 %v638, %v818
        %v820 = vpop.f32.mrb[0].mxu0
        %v821 = vpop.f32.mrb[0].mxu0
        %v822 = vadd.f32 %v638, %v821
        %v823 = vpop.f32.mrb[0].mxu0
        %824 = vmatprep.mubr.bf16.mxu0 0
        %825 = vmatmul.mubr.bf16.gmra.mrb[0].mxu0 %v612
        %v826 = vpop.f32.mrb[0].mxu0
        %v827 = vadd.f32 %v638, %v826
        %v828 = vpop.f32.mrb[0].mxu0
        %v829 = vpop.f32.mrb[0].mxu0
        %v830 = vadd.f32 %v638, %v829
        %v831 = vpop.f32.mrb[0].mxu0
        %832 = vmatprep.mubr.bf16.mxu0 0
        %833 = vmatmul.mubr.bf16.gmra.mrb[0].mxu0 %v613
        %v834 = vpop.f32.mrb[0].mxu0
        %v835 = vadd.f32 %v638, %v834
        %v836 = vpop.f32.mrb[0].mxu0
        %v837 = vpop.f32.mrb[0].mxu0
        %v838 = vadd.f32 %v638, %v837
        %v839 = vpop.f32.mrb[0].mxu0
        %840 = vmatprep.mubr.bf16.mxu0 0
        %841 = vmatmul.mubr.bf16.gmra.mrb[0].mxu0 %v614
        %v842 = vpop.f32.mrb[0].mxu0
        %v843 = vadd.f32 %v638, %v842
        %v844 = vpop.f32.mrb[0].mxu0
        %v845 = vpop.f32.mrb[0].mxu0
        %v846 = vadd.f32 %v638, %v845
        %v847 = vpop.f32.mrb[0].mxu0
        %848 = vdwg.mxu0
        %v849 = vmax.f32 %v723, 0.0
        %v850 = vmax.f32 %v726, 0.0
        %v851 = vmax.f32 %v731, 0.0
        %v852 = vmax.f32 %v734, 0.0
        %v853 = vmax.f32 %v739, 0.0
        %v854 = vmax.f32 %v742, 0.0
        %v855 = vmax.f32 %v747, 0.0
        %v856 = vmax.f32 %v750, 0.0
        %v857 = vmax.f32 %v755, 0.0
        %v858 = vmax.f32 %v758, 0.0
        %v859 = vmax.f32 %v763, 0.0
        %v860 = vmax.f32 %v766, 0.0
        %v861 = vmax.f32 %v771, 0.0
        %v862 = vmax.f32 %v774, 0.0
        %v863 = vmax.f32 %v779, 0.0
        %v864 = vmax.f32 %v782, 0.0
        %v865 = vmax.f32 %v787, 0.0
        %v866 = vmax.f32 %v790, 0.0
        %v867 = vmax.f32 %v795, 0.0
        %v868 = vmax.f32 %v798, 0.0
        %v869 = vmax.f32 %v803, 0.0
        %v870 = vmax.f32 %v806, 0.0
        %v871 = vmax.f32 %v811, 0.0
        %v872 = vmax.f32 %v814, 0.0
        %v873 = vmax.f32 %v819, 0.0
        %v874 = vmax.f32 %v822, 0.0
        %v875 = vmax.f32 %v827, 0.0
        %v876 = vmax.f32 %v830, 0.0
        %v877 = vmax.f32 %v835, 0.0
        %v878 = vmax.f32 %v838, 0.0
        %v879 = vmax.f32 %v843, 0.0
        %v880 = vmax.f32 %v846, 0.0
        %v881 = vpack.c.bf16 %v850, %v849
        %v882 = vpack.c.bf16 %v852, %v851
        %v883 = vpack.c.bf16 %v854, %v853
        %v884 = vpack.c.bf16 %v856, %v855
        %v885 = vpack.c.bf16 %v858, %v857
        %v886 = vpack.c.bf16 %v860, %v859
        %v887 = vpack.c.bf16 %v862, %v861
        %v888 = vpack.c.bf16 %v864, %v863
        %v889 = vpack.c.bf16 %v866, %v865
        %v890 = vpack.c.bf16 %v868, %v867
        %v891 = vpack.c.bf16 %v870, %v869
        %v892 = vpack.c.bf16 %v872, %v871
        %v893 = vpack.c.bf16 %v874, %v873
        %v894 = vpack.c.bf16 %v876, %v875
        %v895 = vpack.c.bf16 %v878, %v877
        %v896 = vpack.c.bf16 %v880, %v879
        %s897 = scalar_lea.vmem [#allocation5], 128
        %v898 = vld [vmem:[%s897] sm:$0xf]
        %v899 = vld [vmem:[%s897 + $0x4] sm:$0xf]
        %v900 = vld [vmem:[%s897 + $0x8] sm:$0xf]
        %v901 = vld [vmem:[%s897 + $0xc] sm:$0xf]
        %v902 = vld [vmem:[%s897 + $0x10] sm:$0xf]
        %v903 = vld [vmem:[%s897 + $0x14] sm:$0xf]
        %v904 = vld [vmem:[%s897 + $0x18] sm:$0xf]
        %v905 = vld [vmem:[%s897 + $0x1c] sm:$0xf]
        %v906 = vld [vmem:[%s897 + $0x20] sm:$0xf]
        %v907 = vld [vmem:[%s897 + $0x24] sm:$0xf]
        %v908 = vld [vmem:[%s897 + $0x28] sm:$0xf]
        %v909 = vld [vmem:[%s897 + $0x2c] sm:$0xf]
        %v910 = vld [vmem:[%s897 + $0x30] sm:$0xf]
        %v911 = vld [vmem:[%s897 + $0x34] sm:$0xf]
        %v912 = vld [vmem:[%s897 + $0x38] sm:$0xf]
        %v913 = vld [vmem:[%s897 + $0x3c] sm:$0xf]
        %s914 = scalar_lea.vmem %s2, 2
        %v915 = vld [vmem:[%s914] sm:$0x1]
        %v917 = vlaneseq
        %v918 = vshrl.u32 %v917, 7
        %v919 = vsub.s32 0, %v918
        %v920 = vrot.slane %v915, %v919
        %v938 = vunpack.c.l.b16 %v898
        %v939 = vunpack.c.l.b16 %v899
        %v940 = vunpack.c.l.b16 %v900
        %v941 = vunpack.c.l.b16 %v901
        %v942 = vunpack.c.l.b16 %v902
        %v943 = vunpack.c.l.b16 %v903
        %v944 = vunpack.c.l.b16 %v904
        %v945 = vunpack.c.l.b16 %v905
        %v946 = vunpack.c.l.b16 %v906
        %v947 = vunpack.c.l.b16 %v907
        %v948 = vunpack.c.l.b16 %v908
        %v949 = vunpack.c.l.b16 %v909
        %v950 = vunpack.c.l.b16 %v910
        %v951 = vunpack.c.l.b16 %v911
        %v952 = vunpack.c.l.b16 %v912
        %v953 = vunpack.c.l.b16 %v913
        %v954 = vpack.c.b16 %v939, %v938
        %v955 = vpack.c.b16 %v941, %v940
        %v956 = vpack.c.b16 %v943, %v942
        %v957 = vpack.c.b16 %v945, %v944
        %v958 = vpack.c.b16 %v947, %v946
        %v959 = vpack.c.b16 %v949, %v948
        %v960 = vpack.c.b16 %v951, %v950
        %v961 = vpack.c.b16 %v953, %v952
        %970 = vmatprep.subr.bf16.mxu0 0
        %971 = vmatpush1.bf16.msra.mxu0 %v954
        %972 = vmatprep.subr.bf16.mxu0 0
        %973 = vmatpush1.bf16.msra.mxu0 %v955
        %974 = vmatprep.subr.bf16.mxu0 0
        %975 = vmatpush1.bf16.msra.mxu0 %v956
        %976 = vmatprep.subr.bf16.mxu0 0
        %977 = vmatpush1.bf16.msra.mxu0 %v957
        %978 = vmatprep.subr.bf16.mxu0 0
        %979 = vmatpush1.bf16.msra.mxu0 %v958
        %980 = vmatprep.subr.bf16.mxu0 0
        %981 = vmatpush1.bf16.msra.mxu0 %v959
        %982 = vmatprep.subr.bf16.mxu0 0
        %983 = vmatpush1.bf16.msra.mxu0 %v960
        %984 = vmatprep.subr.bf16.mxu0 0
        %985 = vmatpush1.bf16.msra.mxu0 %v961
        %986 = vmatprep.subr.bf16.mxu0 0
        %987 = vmatpush1.bf16.msra.mxu0 0
        %988 = vmatprep.subr.bf16.mxu0 0
        %989 = vmatpush1.bf16.msra.mxu0 0
        %990 = vmatprep.subr.bf16.mxu0 0
        %991 = vmatpush1.bf16.msra.mxu0 0
        %992 = vmatprep.subr.bf16.mxu0 0
        %993 = vmatpush1.bf16.msra.mxu0 0
        %994 = vmatprep.subr.bf16.mxu0 0
        %995 = vmatpush1.bf16.msra.mxu0 0
        %996 = vmatprep.subr.bf16.mxu0 0
        %997 = vmatpush1.bf16.msra.mxu0 0
        %998 = vmatprep.subr.bf16.mxu0 0
        %999 = vmatpush1.bf16.msra.mxu0 0
        %1000 = vmatprep.subr.bf16.mxu0 0
        %1001 = vmatpush1.bf16.msra.mxu0 0
        %1002 = vmatprep.mubr.bf16.mxu0 0
        %1003 = vmatmul.mubr.bf16.gmra.mrb[0].mxu0 %v881
        %v1004 = vpop.f32.mrb[0].mxu0
        %v1005 = vadd.f32 %v920, %v1004
        %v1006 = vpop.f32.mrb[0].mxu0
        %v1007 = vpop.f32.mrb[0].mxu0
        %v1008 = vadd.f32 %v920, %v1007
        %v1009 = vpop.f32.mrb[0].mxu0
        %1010 = vmatprep.mubr.bf16.mxu0 0
        %1011 = vmatmul.mubr.bf16.gmra.mrb[0].mxu0 %v882
        %v1012 = vpop.f32.mrb[0].mxu0
        %v1013 = vadd.f32 %v920, %v1012
        %v1014 = vpop.f32.mrb[0].mxu0
        %v1015 = vpop.f32.mrb[0].mxu0
        %v1016 = vadd.f32 %v920, %v1015
        %v1017 = vpop.f32.mrb[0].mxu0
        %1018 = vmatprep.mubr.bf16.mxu0 0
        %1019 = vmatmul.mubr.bf16.gmra.mrb[0].mxu0 %v883
        %v1020 = vpop.f32.mrb[0].mxu0
        %v1021 = vadd.f32 %v920, %v1020
        %v1022 = vpop.f32.mrb[0].mxu0
        %v1023 = vpop.f32.mrb[0].mxu0
        %v1024 = vadd.f32 %v920, %v1023
        %v1025 = vpop.f32.mrb[0].mxu0
        %1026 = vmatprep.mubr.bf16.mxu0 0
        %1027 = vmatmul.mubr.bf16.gmra.mrb[0].mxu0 %v884
        %v1028 = vpop.f32.mrb[0].mxu0
        %v1029 = vadd.f32 %v920, %v1028
        %v1030 = vpop.f32.mrb[0].mxu0
        %v1031 = vpop.f32.mrb[0].mxu0
        %v1032 = vadd.f32 %v920, %v1031
        %v1033 = vpop.f32.mrb[0].mxu0
        %1034 = vmatprep.mubr.bf16.mxu0 0
        %1035 = vmatmul.mubr.bf16.gmra.mrb[0].mxu0 %v885
        %v1036 = vpop.f32.mrb[0].mxu0
        %v1037 = vadd.f32 %v920, %v1036
        %v1038 = vpop.f32.mrb[0].mxu0
        %v1039 = vpop.f32.mrb[0].mxu0
        %v1040 = vadd.f32 %v920, %v1039
        %v1041 = vpop.f32.mrb[0].mxu0
        %1042 = vmatprep.mubr.bf16.mxu0 0
        %1043 = vmatmul.mubr.bf16.gmra.mrb[0].mxu0 %v886
        %v1044 = vpop.f32.mrb[0].mxu0
        %v1045 = vadd.f32 %v920, %v1044
        %v1046 = vpop.f32.mrb[0].mxu0
        %v1047 = vpop.f32.mrb[0].mxu0
        %v1048 = vadd.f32 %v920, %v1047
        %v1049 = vpop.f32.mrb[0].mxu0
        %1050 = vmatprep.mubr.bf16.mxu0 0
        %1051 = vmatmul.mubr.bf16.gmra.mrb[0].mxu0 %v887
        %v1052 = vpop.f32.mrb[0].mxu0
        %v1053 = vadd.f32 %v920, %v1052
        %v1054 = vpop.f32.mrb[0].mxu0
        %v1055 = vpop.f32.mrb[0].mxu0
        %v1056 = vadd.f32 %v920, %v1055
        %v1057 = vpop.f32.mrb[0].mxu0
        %1058 = vmatprep.mubr.bf16.mxu0 0
        %1059 = vmatmul.mubr.bf16.gmra.mrb[0].mxu0 %v888
        %v1060 = vpop.f32.mrb[0].mxu0
        %v1061 = vadd.f32 %v920, %v1060
        %v1062 = vpop.f32.mrb[0].mxu0
        %v1063 = vpop.f32.mrb[0].mxu0
        %v1064 = vadd.f32 %v920, %v1063
        %v1065 = vpop.f32.mrb[0].mxu0
        %1066 = vmatprep.mubr.bf16.mxu0 0
        %1067 = vmatmul.mubr.bf16.gmra.mrb[0].mxu0 %v889
        %v1068 = vpop.f32.mrb[0].mxu0
        %v1069 = vadd.f32 %v920, %v1068
        %v1070 = vpop.f32.mrb[0].mxu0
        %v1071 = vpop.f32.mrb[0].mxu0
        %v1072 = vadd.f32 %v920, %v1071
        %v1073 = vpop.f32.mrb[0].mxu0
        %1074 = vmatprep.mubr.bf16.mxu0 0
        %1075 = vmatmul.mubr.bf16.gmra.mrb[0].mxu0 %v890
        %v1076 = vpop.f32.mrb[0].mxu0
        %v1077 = vadd.f32 %v920, %v1076
        %v1078 = vpop.f32.mrb[0].mxu0
        %v1079 = vpop.f32.mrb[0].mxu0
        %v1080 = vadd.f32 %v920, %v1079
        %v1081 = vpop.f32.mrb[0].mxu0
        %1082 = vmatprep.mubr.bf16.mxu0 0
        %1083 = vmatmul.mubr.bf16.gmra.mrb[0].mxu0 %v891
        %v1084 = vpop.f32.mrb[0].mxu0
        %v1085 = vadd.f32 %v920, %v1084
        %v1086 = vpop.f32.mrb[0].mxu0
        %v1087 = vpop.f32.mrb[0].mxu0
        %v1088 = vadd.f32 %v920, %v1087
        %v1089 = vpop.f32.mrb[0].mxu0
        %1090 = vmatprep.mubr.bf16.mxu0 0
        %1091 = vmatmul.mubr.bf16.gmra.mrb[0].mxu0 %v892
        %v1092 = vpop.f32.mrb[0].mxu0
        %v1093 = vadd.f32 %v920, %v1092
        %v1094 = vpop.f32.mrb[0].mxu0
        %v1095 = vpop.f32.mrb[0].mxu0
        %v1096 = vadd.f32 %v920, %v1095
        %v1097 = vpop.f32.mrb[0].mxu0
        %1098 = vmatprep.mubr.bf16.mxu0 0
        %1099 = vmatmul.mubr.bf16.gmra.mrb[0].mxu0 %v893
        %v1100 = vpop.f32.mrb[0].mxu0
        %v1101 = vadd.f32 %v920, %v1100
        %v1102 = vpop.f32.mrb[0].mxu0
        %v1103 = vpop.f32.mrb[0].mxu0
        %v1104 = vadd.f32 %v920, %v1103
        %v1105 = vpop.f32.mrb[0].mxu0
        %1106 = vmatprep.mubr.bf16.mxu0 0
        %1107 = vmatmul.mubr.bf16.gmra.mrb[0].mxu0 %v894
        %v1108 = vpop.f32.mrb[0].mxu0
        %v1109 = vadd.f32 %v920, %v1108
        %v1110 = vpop.f32.mrb[0].mxu0
        %v1111 = vpop.f32.mrb[0].mxu0
        %v1112 = vadd.f32 %v920, %v1111
        %v1113 = vpop.f32.mrb[0].mxu0
        %1114 = vmatprep.mubr.bf16.mxu0 0
        %1115 = vmatmul.mubr.bf16.gmra.mrb[0].mxu0 %v895
        %v1116 = vpop.f32.mrb[0].mxu0
        %v1117 = vadd.f32 %v920, %v1116
        %v1118 = vpop.f32.mrb[0].mxu0
        %v1119 = vpop.f32.mrb[0].mxu0
        %v1120 = vadd.f32 %v920, %v1119
        %v1121 = vpop.f32.mrb[0].mxu0
        %1122 = vmatprep.mubr.bf16.mxu0 0
        %1123 = vmatmul.mubr.bf16.gmra.mrb[0].mxu0 %v896
        %v1124 = vpop.f32.mrb[0].mxu0
        %v1125 = vadd.f32 %v920, %v1124
        %v1126 = vpop.f32.mrb[0].mxu0
        %v1127 = vpop.f32.mrb[0].mxu0
        %v1128 = vadd.f32 %v920, %v1127
        %v1129 = vpop.f32.mrb[0].mxu0
        %1130 = vdwg.mxu0
        %1131 = vst [vmem:[%s203] sm:$0xff] %v1005
        %1132 = vst [vmem:[%s203 + $0x8] sm:$0xff] %v1008
        %1133 = vst [vmem:[%s203 + $0x10] sm:$0xff] %v1013
        %1134 = vst [vmem:[%s203 + $0x18] sm:$0xff] %v1016
        %1135 = vst [vmem:[%s203 + $0x20] sm:$0xff] %v1021
        %1136 = vst [vmem:[%s203 + $0x28] sm:$0xff] %v1024
        %1137 = vst [vmem:[%s203 + $0x30] sm:$0xff] %v1029
        %1138 = vst [vmem:[%s203 + $0x38] sm:$0xff] %v1032
        %1139 = vst [vmem:[%s203 + $0x40] sm:$0xff] %v1037
        %1140 = vst [vmem:[%s203 + $0x48] sm:$0xff] %v1040
        %1141 = vst [vmem:[%s203 + $0x50] sm:$0xff] %v1045
        %1142 = vst [vmem:[%s203 + $0x58] sm:$0xff] %v1048
        %1143 = vst [vmem:[%s203 + $0x60] sm:$0xff] %v1053
        %1144 = vst [vmem:[%s203 + $0x68] sm:$0xff] %v1056
        %1145 = vst [vmem:[%s203 + $0x70] sm:$0xff] %v1061
        %1146 = vst [vmem:[%s203 + $0x78] sm:$0xff] %v1064
        %1147 = vst [vmem:[%s203 + $0x80] sm:$0xff] %v1069
        %1148 = vst [vmem:[%s203 + $0x88] sm:$0xff] %v1072
        %1149 = vst [vmem:[%s203 + $0x90] sm:$0xff] %v1077
        %1150 = vst [vmem:[%s203 + $0x98] sm:$0xff] %v1080
        %1151 = vst [vmem:[%s203 + $0xa0] sm:$0xff] %v1085
        %1152 = vst [vmem:[%s203 + $0xa8] sm:$0xff] %v1088
        %1153 = vst [vmem:[%s203 + $0xb0] sm:$0xff] %v1093
        %1154 = vst [vmem:[%s203 + $0xb8] sm:$0xff] %v1096
        %1155 = vst [vmem:[%s203 + $0xc0] sm:$0xff] %v1101
        %1156 = vst [vmem:[%s203 + $0xc8] sm:$0xff] %v1104
        %1157 = vst [vmem:[%s203 + $0xd0] sm:$0xff] %v1109
        %1158 = vst [vmem:[%s203 + $0xd8] sm:$0xff] %v1112
        %1159 = vst [vmem:[%s203 + $0xe0] sm:$0xff] %v1117
        %1160 = vst [vmem:[%s203 + $0xe8] sm:$0xff] %v1120
        %1161 = vst [vmem:[%s203 + $0xf0] sm:$0xff] %v1125
        %1162 = vst [vmem:[%s203 + $0xf8] sm:$0xff] %v1128
        %s1163 = sand.u32 %s97, 1
        %s1164 = scalar_lea.sflag [#allocation4], %s1163
        %s1165 = sand.u32 %s97, 1
        %s1166 = smul.addr %s1165, 256
        %s1167 = scalar_lea.vmem [#allocation7], %s1166
        // Predicated region
        $region41: #{tpu_custom_call.1} parent=31 // pred_check
          %p1168 = pneg %p107
        $region42: #{tpu_custom_call.1} parent=31 // pred_check_branch
          %1170 = sbr.rel (%p1168) target = $region44
        $region43: #{tpu_custom_call.1} parent=31 // pred_region
          %s1171 = smul.u32 32, %s21
          %s1173 = ssub.s32 4096, 4096
          %1174 = vsyncadd %s1164, %s1173
          %s1175 = smul.addr %s1171, 128
          %s1176 = scalar_lea.hbm %s3, %s1175
          %s1177 = sshll.u32 %s1167, 4
          %s1178 = int_to_ptr.vmem [resolvable:$true] %s1177
          %1183 = dma.vmem_to_hbm [thread:$0]  %s1178, 4096, %s1176, %s1164, 128, 128, 8
        $region44: #{tpu_custom_call.1} parent=31 // pred_fallthru
          _
      $region32: #{tpu_custom_call.1} parent=5 // pred_fallthru
        _
      %p1184 = scmp.le.s32.totalorder 2, %s16
      // Predicated region
      $region45: #{tpu_custom_call.1} parent=5 // pred_check
        %p1185 = pneg %p1184
      $region46: #{tpu_custom_call.1} parent=5 // pred_check_branch
        %1187 = sbr.rel (%p1185) target = $region48
      $region47: #{tpu_custom_call.1} parent=5 // pred_region
        %s1188 = ssub.s32 %s16, 2
        // Predicated region
        $region49: #{tpu_custom_call.1} parent=47 // pred_check
          %p1189 = pneg %p113
        $region50: #{tpu_custom_call.1} parent=47 // pred_check_branch
          %1191 = sbr.rel (%p1189) target = $region52
        $region51: #{tpu_custom_call.1} parent=47 // pred_region
          %s1192 = sand.u32 %s98, 1
          %s1193 = scalar_lea.sflag [#allocation4], %s1192
          %s1194 = sand.u32 %s98, 1
          %s1195 = smul.addr %s1194, 256
          %s1196 = scalar_lea.vmem [#allocation7], %s1195
          %1197 = dma.done %s1193, 4096
        $region52: #{tpu_custom_call.1} parent=47 // pred_fallthru
          _
      $region48: #{tpu_custom_call.1} parent=5 // pred_fallthru
        _
    $region6: #{tpu_custom_call.1} parent=1 // loop_footer
      %s20 = sadd.s32 1, %s16
    $region7: #{tpu_custom_call.1} parent=1 // loop_footer_branch
      %15 = sbr.rel target = $region3
    $region8: #{tpu_custom_call.1} parent=1 // loop_exit
      _
    %1198 = vsyncpa [#allocation3], 1
    %s1199 = scalar_lea.sflag [#allocation3], 1
    %1200 = vsyncpa %s1199, 1
    %1201 = vsyncpa [#allocation6], 1
    %1202 = vsyncpa [#allocation4], 1
    %s1203 = scalar_lea.sflag [#allocation4], 1
    %1204 = vsyncpa %s1203, 1

</llo_original>
